<compile_context>
chip_gen: v5e
topology: v5e:2x2
jax: 0.10.0
libtpu: 0.0.40
codegen_flags: <defaults>
</compile_context>

<pallas_src>
import functools

import jax
import jax.numpy as jnp
from jax.experimental import pallas as pl
from jax.experimental.pallas import tpu as pltpu


def _asr_loss_kernel(pred_ref, gt_ref, out_ref, *, inv_batch: float):
    # Cast in-kernel (no-op for f32 inputs; mandatory on v5e for narrow dtypes,
    # and keeps the HBM->VMEM DMA narrow for bf16/fp16 production inputs).
    pred = pred_ref[...].astype(jnp.float32)
    gt = gt_ref[...].astype(jnp.float32)
    diff = pred - gt
    sq = diff * diff
    # Single lane-axis reduction over the (1, B*D) slab, then fold in the
    # static 1/B factor (mean over batch of per-row sums == total_sum / B).
    out_ref[0, 0] = jnp.sum(sq) * inv_batch


def asr_loss(predicted_stature: jax.Array, groundtruth_stature: jax.Array) -> jax.Array:
    assert predicted_stature.shape == groundtruth_stature.shape
    batch, feat = predicted_stature.shape

    # Lane-dense view: (B, D) -> (1, B*D).  Row-major reshape of a contiguous
    # array is a layout bitcast, not a copy.
    pred_flat = predicted_stature.reshape(1, batch * feat)
    gt_flat = groundtruth_stature.reshape(1, batch * feat)

    out = pl.pallas_call(
        functools.partial(_asr_loss_kernel, inv_batch=1.0 / batch),
        out_shape=jax.ShapeDtypeStruct((1, 1), jnp.float32),
        in_specs=[
            pl.BlockSpec(memory_space=pltpu.MemorySpace.VMEM),
            pl.BlockSpec(memory_space=pltpu.MemorySpace.VMEM),
        ],
        out_specs=pl.BlockSpec(memory_space=pltpu.MemorySpace.SMEM),
    )(pred_flat, gt_flat)
    # Scalar loss (matches the PyTorch scalar).  Free under jit.
    return jnp.squeeze(out)


if __name__ == "__main__":
    batch_size = 32
    num_bone_lengths = 18

    key = jax.random.PRNGKey(0)
    k1, k2 = jax.random.split(key)
    groundtruth_stature = jax.random.uniform(
        k1, (batch_size, num_bone_lengths), jnp.float32
    )
    predicted_stature = jax.random.uniform(
        k2, (batch_size, num_bone_lengths), jnp.float32
    )

    # Jit the wrapper so the reshape / squeeze fold into the trace and the
    # only runtime work is the single custom call.
    loss_fn = jax.jit(asr_loss)
    loss = loss_fn(predicted_stature, groundtruth_stature)
    jax.block_until_ready(loss)

    # Reference check in plain JAX (mirrors the PyTorch forward exactly).
    ref = jnp.mean(jnp.sum((predicted_stature - groundtruth_stature) ** 2, axis=1))
    assert jnp.allclose(loss, ref, rtol=1e-6, atol=1e-6), (loss, ref)

    print("KERNEL_OK")
</pallas_src>

<mosaic_0001>
module attributes {stable_mosaic.version = 11 : i64} {
  func.func @_asr_loss_kernel(%arg0: memref<1x576xf32, #tpu.memory_space<vmem>>, %arg1: memref<1x576xf32, #tpu.memory_space<vmem>>, %arg2: memref<1x1xf32, #tpu.memory_space<smem>>) attributes {dimension_semantics = [], scalar_prefetch = 0 : i64, scratch_operands = 0 : i64, tpu.core_type = #tpu.core_type<tc>} {
    %c0 = arith.constant 0 : index
    %c0_0 = arith.constant 0 : index
    %0 = vector.load %arg0[%c0, %c0_0] : memref<1x576xf32, #tpu.memory_space<vmem>>, vector<1x576xf32>
    %c0_1 = arith.constant 0 : index
    %c0_2 = arith.constant 0 : index
    %1 = vector.load %arg1[%c0_1, %c0_2] : memref<1x576xf32, #tpu.memory_space<vmem>>, vector<1x576xf32>
    %2 = arith.subf %0, %1 : vector<1x576xf32>
    %3 = arith.mulf %2, %2 : vector<1x576xf32>
    %4 = vector.shape_cast %3 : vector<1x576xf32> to vector<1x1x576xf32>
    %cst = arith.constant dense<0.000000e+00> : vector<1xf32>
    %5 = vector.multi_reduction <add>, %4, %cst [1, 2] : vector<1x1x576xf32> to vector<1xf32>
    %6 = vector.shape_cast %5 : vector<1xf32> to vector<1x1x1xf32>
    %7 = vector.extract %6[0, 0, 0] : f32 from vector<1x1x1xf32>
    %cst_3 = arith.constant 3.125000e-02 : f32
    %8 = arith.mulf %7, %cst_3 : f32
    %c0_4 = arith.constant 0 : index
    %c0_5 = arith.constant 0 : index
    %9 = memref.load %arg2[%c0_4, %c0_5] : memref<1x1xf32, #tpu.memory_space<smem>>
    memref.store %8, %arg2[%c0_4, %c0_5] : memref<1x1xf32, #tpu.memory_space<smem>>
    return
  }
}

</mosaic_0001>

<llo_original>
// kernel: asr_loss.1
$region0: #{asr_loss.1}
  #allocation0 [shape = 'u32[]', space=smem, size = 0x4, offset = 0x4, fixed_abs, tag = 'smem constant byte address 0x4 - core index']
  #allocation1 [shape = 'u32[72,128]{1,0:T(1,128)}', space=vmem, size = 0x9000, scoped, tag = 'internal scratch']
  %s0 = inlined_call_operand.vmem [shape: f32[1,576], index: 0, kind: input, shape index: {}]
  %s1 = inlined_call_operand.vmem [shape: f32[1,576], index: 1, kind: input, shape index: {}]
  %s2 = inlined_call_operand.hbm [shape: f32[1,1], index: 2, kind: output, shape index: {}]
  %s3 = sld [smem:[#allocation0]]
  $region18: #{asr_loss.1} parent=0
    _
  %s5 = ssub.s32 1, %s3
  %s6 = scalar_select 0, %s5, %s3
  $region1: #{asr_loss.1} parent=0
    #allocation2 [shape = 'u8[512]{0}', space=smem, size = 0x200, scoped, tag = 'output window, operand 0, single buffered']
    #allocation3 [shape = 's32[1]{0}', space=sflag, size = 0x4, scoped, tag = 'scoped memory for asr_loss.1']
    %7 = vsyncpa [#allocation3], 0
    // Predicated region
    $region2: #{asr_loss.1} parent=1 // pred_check
      _
    $region3: #{asr_loss.1} parent=1 // pred_check_branch
      %9 = sbr.rel (0) target = $region5
    $region4: #{asr_loss.1} parent=1 // pred_region
      _
    $region5: #{asr_loss.1} parent=1 // pred_fallthru
      _
    // Predicated region
    $region6: #{asr_loss.1} parent=1 // pred_check
      _
    $region7: #{asr_loss.1} parent=1 // pred_check_branch
      %11 = sbr.rel (0) target = $region9
    $region8: #{asr_loss.1} parent=1 // pred_region
      _
    $region9: #{asr_loss.1} parent=1 // pred_fallthru
      _
    %v12 = vld [vmem:[%s0] sm:$0x1f]
    %v13 = vld [vmem:[%s1] sm:$0x1f]
    %v14 = vsub.f32 %v12, %v13
    %v15 = vmul.f32 %v14, %v14
    %v17 = vperm.slane %v15, 0
    %v18 = vperm.slane %v15, 1
    %v19 = vperm.slane %v15, 2
    %v20 = vperm.slane %v15, 3
    %v21 = vperm.slane %v15, 4
    %vm27 = vcmask 1040384
    %v28 = vsel %vm27, %v17, 0.0
    %v29 = vsel %vm27, %v18, 0.0
    %v30 = vadd.f32 %v28, %v29
    %v31 = vsel %vm27, %v19, 0.0
    %v32 = vadd.f32 %v30, %v31
    %v33 = vsel %vm27, %v20, 0.0
    %v34 = vadd.f32 %v32, %v33
    %vm35 = vcmask 516096
    %v36 = vsel %vm35, %v21, 0.0
    %v37 = vadd.f32 %v34, %v36
    %38 = vadd.xlane.f32.xlu0 %v37
    %v39 = vpop.xlane.xlu0 %38
    %v40 = vrot.slane %v39, 4
    %v41 = vadd.f32 %v39, %v40
    %v42 = vrot.slane %v41, 2
    %v43 = vadd.f32 %v41, %v42
    %v44 = vrot.slane %v43, 1
    %v45 = vadd.f32 %v43, %v44
    %s46 = vtos %v45
    %s47 = smul.f32 %s46, 0.03125
    %s48 = scalar_lea.smem [#allocation2], 0
    %49 = sst [smem:[%s48]] %s47
    // Predicated region
    $region10: #{asr_loss.1} parent=1 // pred_check
      _
    $region11: #{asr_loss.1} parent=1 // pred_check_branch
      %51 = sbr.rel (0) target = $region13
    $region12: #{asr_loss.1} parent=1 // pred_region
      %53 = vsyncadd [#allocation3], 0
      %s55 = sshll.u32 %s2, 4
      %s56 = int_to_ptr.hbm [resolvable:$true] %s55
      %58 = dma.smem_to_hbm [#allocation2], 16, %s56, [#allocation3]
    $region13: #{asr_loss.1} parent=1 // pred_fallthru
      _
    // Predicated region
    $region14: #{asr_loss.1} parent=1 // pred_check
      _
    $region15: #{asr_loss.1} parent=1 // pred_check_branch
      %60 = sbr.rel (0) target = $region17
    $region16: #{asr_loss.1} parent=1 // pred_region
      %62 = dma.done [#allocation3], 16
    $region17: #{asr_loss.1} parent=1 // pred_fallthru
      _
    %63 = sfence
    %64 = vsyncpa [#allocation3], 1

</llo_original>
